<compile_context>
chip_gen: v5e
topology: v5e:2x2
jax: 0.10.0
libtpu: 0.0.40
codegen_flags: <defaults>
</compile_context>

<pallas_src>
import jax
import jax.numpy as jnp
from jax import lax
from jax.experimental import pallas as pl
from jax.experimental.pallas import tpu as pltpu


# ------------------------------- helpers ------------------------------------ #
def _round_up(x, m):
    return ((x + m - 1) // m) * m


def _pick_row_tile(H, W, max_rows):
    """Largest divisor TH of H with TH*W <= max_rows, preferring 16-aligned
    (bf16 sublane packing) row counts.  Fallback = smallest legal tile (never
    the whole image)."""
    divisors = [d for d in range(1, H + 1) if H % d == 0]
    for align in (16, 8):
        cands = [d for d in divisors if (d * W) % align == 0 and d * W <= max_rows]
        if cands:
            return max(cands)
    small = [d for d in divisors if (d * W) % 8 == 0]
    return min(small) if small else 1


# ----------------------------- Pallas kernel -------------------------------- #
def _make_net_kernel(*, W, THW, hidden):
    """Builds the fused conv-as-matmul + ReLU + avg-pool + fc kernel.

    xw_ref : (Hp*W, KW)    bf16  width-expanded padded image (bias col = 1.0)
    wc_ref : (3*KW, 512)   bf16  conv weight, rows (kh, kw, c); conv bias folded
                                 into the kh=0 slice's bias row
    wf_ref : (512, n_pad)  f32   fc weight^T with 1/HW pooling scale folded in
    bf_ref : (1, n_pad)    f32   fc bias
    out_ref: (8, n_pad)    f32   output row (replicated over sublanes)
    acc_ref: (8, 512)      f32   sublane-aligned pooled-sum accumulator
    """

    def kernel(xw_ref, wc_ref, wf_ref, bf_ref, out_ref, acc_ref):
        j = pl.program_id(1)

        @pl.when(j == 0)
        def _init():
            acc_ref[...] = jnp.zeros_like(acc_ref)

        # In-kernel H-direction im2col: three row-shifted slices of the
        # VMEM-resident width-expanded slab, concatenated along K (lanes).
        base = j * THW
        pieces = []
        for kh in range(3):
            start = base + kh * W
            if W % 8 == 0:
                start = pl.multiple_of(start, 8)
            pieces.append(xw_ref[pl.ds(start, THW), :])          # (THW, KW) bf16
        patches = jnp.concatenate(pieces, axis=-1)               # (THW, 3*KW)

        # Conv2d as a single MXU matmul (bias folded into the 1.0 column),
        # then ReLU on the VPU.  f32 accumulation.
        conv = jnp.dot(patches, wc_ref[...],
                       preferred_element_type=jnp.float32)       # (THW, 512)
        conv = jnp.maximum(conv, 0.0)

        # Sublane-aligned partial pool sum (no per-step cross-sublane reduce).
        if THW % 8 == 0:
            acc_ref[...] += jnp.sum(conv.reshape(THW // 8, 8, hidden), axis=0)
        else:  # rare fallback when W has no 8-aligned row tiling
            acc_ref[0:1, :] = acc_ref[0:1, :] + jnp.sum(conv, axis=0,
                                                        keepdims=True)

        @pl.when(j == pl.num_programs(1) - 1)
        def _epilogue():
            # fc is linear: fc(sum of partials) == sum of fc(partials).
            res8 = jnp.dot(acc_ref[...], wf_ref[...],
                           preferred_element_type=jnp.float32)   # (8, n_pad)
            res = jnp.sum(res8, axis=0, keepdims=True) + bf_ref[...]
            out_ref[...] = jnp.broadcast_to(res, out_ref.shape)  # lane-dense

    return kernel


# ------------------------------ host glue ----------------------------------- #
def net_forward(x, conv_w, conv_b, fc_w, fc_b, *,
                compute_dtype=jnp.bfloat16, max_tile_rows=4096):
    """x: (B, C, H, W) f32.  Returns (B, num_class) f32."""
    B, C, H, W = x.shape
    hidden = conv_w.shape[0]        # 512
    num_class = fc_w.shape[0]       # 10
    HW = H * W
    Hp = H + 2

    KW = _round_up(3 * C + 1, 8)                 # per-input-row patch width
    n_pad = _round_up(max(num_class, 128), 128)  # lane-dense output width

    # --- width-only expansion (3x, single pass) + constant bias column ------ #
    xp = jnp.pad(x, ((0, 0), (0, 0), (1, 1), (1, 1)))              # (B,C,Hp,Wp)
    cols = [xp[:, :, :, kw:kw + W] for kw in range(3)]             # 3x (B,C,Hp,W)
    xw = jnp.stack(cols, axis=-1)                                  # (B,C,Hp,W,3)
    xw = xw.transpose(0, 2, 3, 4, 1).reshape(B, Hp * W, 3 * C)     # col = kw*C+c
    xw = jnp.pad(xw, ((0, 0), (0, 0), (0, KW - 3 * C)))
    xw = xw.at[:, :, 3 * C].set(1.0)                               # bias column
    xw = xw.astype(compute_dtype)                                  # (B, Hp*W, KW)

    # --- conv weight: rows ordered (kh, kw, c); bias in the kh=0 slice ------ #
    w_parts = []
    for kh in range(3):
        wk = conv_w[:, :, kh, :].transpose(2, 1, 0).reshape(3 * C, hidden)
        brow = (conv_b if kh == 0 else jnp.zeros_like(conv_b)).reshape(1, hidden)
        zpad = jnp.zeros((KW - 3 * C - 1, hidden), conv_w.dtype)
        w_parts.append(jnp.concatenate([wk, brow, zpad], axis=0))  # (KW, 512)
    wc_t = jnp.concatenate(w_parts, axis=0).astype(compute_dtype)  # (3*KW, 512)

    # --- fc weight: fold 1/HW pooling scale; pad classes to lane width ------ #
    wf_t = (fc_w.T / float(HW)).astype(jnp.float32)                # (512, nc)
    wf_t = jnp.pad(wf_t, ((0, 0), (0, n_pad - num_class)))
    bf = jnp.pad(fc_b.reshape(1, num_class).astype(jnp.float32),
                 ((0, 0), (0, n_pad - num_class)))

    TH = _pick_row_tile(H, W, max_tile_rows)
    THW = TH * W
    n_h = H // TH

    kernel = _make_net_kernel(W=W, THW=THW, hidden=hidden)

    cost = pl.CostEstimate(
        flops=2 * B * HW * (3 * KW) * hidden + 2 * B * 8 * hidden * n_pad,
        transcendentals=0,
        bytes_accessed=(xw.size * xw.dtype.itemsize
                        + wc_t.size * wc_t.dtype.itemsize
                        + wf_t.size * 4 + bf.size * 4
                        + B * 8 * n_pad * 4),
    )

    out_pad = pl.pallas_call(
        kernel,
        out_shape=jax.ShapeDtypeStruct((B, 8, n_pad), jnp.float32),
        grid_spec=pltpu.PrefetchScalarGridSpec(
            num_scalar_prefetch=0,
            grid=(B, n_h),
            in_specs=[
                # whole width-expanded slab per batch element (re-DMAed only
                # when the batch index changes)
                pl.BlockSpec((None, Hp * W, KW), lambda i, j: (i, 0, 0)),
                pl.BlockSpec((3 * KW, hidden), lambda i, j: (0, 0)),
                pl.BlockSpec((hidden, n_pad), lambda i, j: (0, 0)),
                pl.BlockSpec((1, n_pad), lambda i, j: (0, 0)),
            ],
            out_specs=pl.BlockSpec((None, 8, n_pad), lambda i, j: (i, 0, 0)),
            scratch_shapes=[pltpu.VMEM((8, hidden), jnp.float32)],
        ),
        compiler_params=pltpu.CompilerParams(
            dimension_semantics=("parallel", "arbitrary"),
            vmem_limit_bytes=32 * 1024 * 1024),   # safe on v5e/v6e/v7x (64 MiB)
        cost_estimate=cost,
    )(xw, wc_t, wf_t, bf)

    return out_pad[:, 0, :num_class]


# ------------------------------ reference ----------------------------------- #
def net_forward_ref(x, conv_w, conv_b, fc_w, fc_b):
    conv = lax.conv_general_dilated(
        x, conv_w, window_strides=(1, 1), padding=((1, 1), (1, 1)),
        dimension_numbers=("NCHW", "OIHW", "NCHW"))
    conv = jnp.maximum(conv + conv_b[None, :, None, None], 0.0)
    feat = conv.mean(axis=(2, 3))                                  # (B, 512)
    return feat @ fc_w.T + fc_b[None, :]


# -------------------------------- driver ------------------------------------ #
if __name__ == "__main__":
    key = jax.random.PRNGKey(0)
    B, C, H, W = 2, 4, 16, 16
    hidden, num_class = 512, 10

    k_x, k_cw, k_cb, k_fw, k_fb = jax.random.split(key, 5)
    x = jax.random.normal(k_x, (B, C, H, W), dtype=jnp.float32)

    # Deterministic PyTorch-style (kaiming-uniform-ish) init.
    fan_conv = C * 3 * 3
    conv_w = jax.random.uniform(k_cw, (hidden, C, 3, 3), jnp.float32,
                                minval=-1.0, maxval=1.0) / jnp.sqrt(fan_conv)
    conv_b = jax.random.uniform(k_cb, (hidden,), jnp.float32,
                                minval=-1.0, maxval=1.0) / jnp.sqrt(fan_conv)
    fc_w = jax.random.uniform(k_fw, (num_class, hidden), jnp.float32,
                              minval=-1.0, maxval=1.0) / jnp.sqrt(hidden)
    fc_b = jax.random.uniform(k_fb, (num_class,), jnp.float32,
                              minval=-1.0, maxval=1.0) / jnp.sqrt(hidden)

    # max_tile_rows=128 forces a 2-step spatial reduction at this toy size so
    # the accumulator init / accumulate / epilogue paths are all exercised.
    out = jax.block_until_ready(
        net_forward(x, conv_w, conv_b, fc_w, fc_b, max_tile_rows=128))
    ref = jax.block_until_ready(net_forward_ref(x, conv_w, conv_b, fc_w, fc_b))

    assert out.shape == (B, num_class), out.shape
    max_err = jnp.max(jnp.abs(out - ref))
    # bf16 matmul operands with f32 accumulation -> slightly loosened tolerance.
    assert jnp.allclose(out, ref, atol=2e-2, rtol=2e-2), f"max abs err {max_err}"
    print("KERNEL_OK")
</pallas_src>

<mosaic_0001>
module attributes {stable_mosaic.version = 11 : i64} {
  func.func @kernel(%arg0: i32, %arg1: i32, %arg2: memref<1x288x16xbf16, #tpu.memory_space<vmem>>, %arg3: memref<48x512xbf16, #tpu.memory_space<vmem>>, %arg4: memref<512x128xf32, #tpu.memory_space<vmem>>, %arg5: memref<1x128xf32, #tpu.memory_space<vmem>>, %arg6: memref<1x8x128xf32, #tpu.memory_space<vmem>>, %arg7: memref<8x512xf32, #tpu.memory_space<vmem>>) attributes {dimension_semantics = [#tpu.dimension_semantics<parallel>, #tpu.dimension_semantics<arbitrary>], iteration_bounds = array<i64: 2, 2>, scalar_prefetch = 0 : i64, scratch_operands = 1 : i64, tpu.core_type = #tpu.core_type<tc>, window_params = [{transform_indices = @transform_0, window_bounds = array<i64: 1, 288, 16>}, {pipeline_mode = #tpu.pipeline_mode<synchronous>, transform_indices = @transform_1, window_bounds = array<i64: 48, 512>}, {pipeline_mode = #tpu.pipeline_mode<synchronous>, transform_indices = @transform_2, window_bounds = array<i64: 512, 128>}, {pipeline_mode = #tpu.pipeline_mode<synchronous>, transform_indices = @transform_3, window_bounds = array<i64: 1, 128>}, {transform_indices = @transform_4, window_bounds = array<i64: 1, 8, 128>}]} {
    %c0_i32 = arith.constant 0 : i32
    %0 = arith.cmpi eq, %arg1, %c0_i32 : i32
    %1 = arith.extui %0 : i1 to i32
    %c0_i32_0 = arith.constant 0 : i32
    %2 = arith.cmpi ne, %1, %c0_i32_0 : i32
    scf.if %2 {
      %cst_16 = arith.constant 0.000000e+00 : f32
      %32 = vector.broadcast %cst_16 : f32 to vector<8x512xf32>
      %c0_17 = arith.constant 0 : index
      %c0_18 = arith.constant 0 : index
      %33 = vector.load %arg7[%c0_17, %c0_18] : memref<8x512xf32, #tpu.memory_space<vmem>>, vector<8x512xf32>
      tpu.vector_store %arg7[%c0_17, %c0_18], %32 {strides = array<i32>} : memref<8x512xf32, #tpu.memory_space<vmem>>, vector<8x512xf32>,
    } else {
    }
    %c128_i32 = arith.constant 128 : i32
    %3 = arith.muli %arg1, %c128_i32 : i32
    %c0_i32_1 = arith.constant 0 : i32
    %4 = arith.addi %3, %c0_i32_1 : i32
    %5 = tpu.assume_multiple %4, 8 : i32
    %c0 = arith.constant 0 : index
    %6 = arith.index_cast %5 : i32 to index
    %c0_2 = arith.constant 0 : index
    %7 = vector.load %arg2[%c0, %6, %c0_2] : memref<1x288x16xbf16, #tpu.memory_space<vmem>>, vector<1x128x16xbf16>
    %8 = vector.shape_cast %7 : vector<1x128x16xbf16> to vector<128x16xbf16>
    %c16_i32 = arith.constant 16 : i32
    %9 = arith.addi %3, %c16_i32 : i32
    %10 = tpu.assume_multiple %9, 8 : i32
    %c0_3 = arith.constant 0 : index
    %11 = arith.index_cast %10 : i32 to index
    %c0_4 = arith.constant 0 : index
    %12 = vector.load %arg2[%c0_3, %11, %c0_4] : memref<1x288x16xbf16, #tpu.memory_space<vmem>>, vector<1x128x16xbf16>
    %13 = vector.shape_cast %12 : vector<1x128x16xbf16> to vector<128x16xbf16>
    %c32_i32 = arith.constant 32 : i32
    %14 = arith.addi %3, %c32_i32 : i32
    %15 = tpu.assume_multiple %14, 8 : i32
    %c0_5 = arith.constant 0 : index
    %16 = arith.index_cast %15 : i32 to index
    %c0_6 = arith.constant 0 : index
    %17 = vector.load %arg2[%c0_5, %16, %c0_6] : memref<1x288x16xbf16, #tpu.memory_space<vmem>>, vector<1x128x16xbf16>
    %18 = vector.shape_cast %17 : vector<1x128x16xbf16> to vector<128x16xbf16>
    %19 = tpu.concatenate %8, %13, %18 in 1 : vector<128x16xbf16>, vector<128x16xbf16>, vector<128x16xbf16> -> vector<128x48xbf16>
    %c0_7 = arith.constant 0 : index
    %c0_8 = arith.constant 0 : index
    %20 = vector.load %arg3[%c0_7, %c0_8] : memref<48x512xbf16, #tpu.memory_space<vmem>>, vector<48x512xbf16>
    %cst = arith.constant dense<0.000000e+00> : vector<128x512xf32>
    %21 = tpu.matmul %19, %20, %cst {dimension_numbers = #tpu.dot_dimension_numbers<[1], [0], [0], [1], [0, 0, 1, 1], [], []>} : vector<128x48xbf16>, vector<48x512xbf16>, vector<128x512xf32> -> vector<128x512xf32>
    %cst_9 = arith.constant 0.000000e+00 : f32
    %22 = vector.broadcast %cst_9 : f32 to vector<128x512xf32>
    %23 = arith.maximumf %21, %22 : vector<128x512xf32>
    %c0_10 = arith.constant 0 : index
    %c0_11 = arith.constant 0 : index
    %24 = vector.load %arg7[%c0_10, %c0_11] : memref<8x512xf32, #tpu.memory_space<vmem>>, vector<8x512xf32>
    %25 = vector.shape_cast %23 : vector<128x512xf32> to vector<16x8x512xf32>
    %cst_12 = arith.constant dense<0.000000e+00> : vector<8x512xf32>
    %26 = vector.multi_reduction <add>, %25, %cst_12 [0] : vector<16x8x512xf32> to vector<8x512xf32>
    %27 = arith.addf %24, %26 : vector<8x512xf32>
    %c0_13 = arith.constant 0 : index
    %c0_14 = arith.constant 0 : index
    %28 = vector.load %arg7[%c0_13, %c0_14] : memref<8x512xf32, #tpu.memory_space<vmem>>, vector<8x512xf32>
    tpu.vector_store %arg7[%c0_13, %c0_14], %27 {strides = array<i32>} : memref<8x512xf32, #tpu.memory_space<vmem>>, vector<8x512xf32>,
    %c1_i32 = arith.constant 1 : i32
    %29 = arith.cmpi eq, %arg1, %c1_i32 : i32
    %30 = arith.extui %29 : i1 to i32
    %c0_i32_15 = arith.constant 0 : i32
    %31 = arith.cmpi ne, %30, %c0_i32_15 : i32
    scf.if %31 {
      %c0_16 = arith.constant 0 : index
      %c0_17 = arith.constant 0 : index
      %32 = vector.load %arg7[%c0_16, %c0_17] : memref<8x512xf32, #tpu.memory_space<vmem>>, vector<8x512xf32>
      %c0_18 = arith.constant 0 : index
      %c0_19 = arith.constant 0 : index
      %33 = vector.load %arg4[%c0_18, %c0_19] : memref<512x128xf32, #tpu.memory_space<vmem>>, vector<512x128xf32>
      %cst_20 = arith.constant dense<0.000000e+00> : vector<8x128xf32>
      %34 = tpu.matmul %32, %33, %cst_20 {dimension_numbers = #tpu.dot_dimension_numbers<[1], [0], [0], [1], [0, 0, 1, 1], [], []>} : vector<8x512xf32>, vector<512x128xf32>, vector<8x128xf32> -> vector<8x128xf32>
      %cst_21 = arith.constant dense<0.000000e+00> : vector<128xf32>
      %35 = vector.multi_reduction <add>, %34, %cst_21 [0] : vector<8x128xf32> to vector<128xf32>
      %36 = vector.shape_cast %35 : vector<128xf32> to vector<1x128xf32>
      %c0_22 = arith.constant 0 : index
      %c0_23 = arith.constant 0 : index
      %37 = vector.load %arg5[%c0_22, %c0_23] : memref<1x128xf32, #tpu.memory_space<vmem>>, vector<1x128xf32>
      %38 = arith.addf %36, %37 : vector<1x128xf32>
      %39 = vector.shape_cast %38 : vector<1x128xf32> to vector<1x128xf32>
      %40 = vector.broadcast %39 : vector<1x128xf32> to vector<8x128xf32>
      %c0_24 = arith.constant 0 : index
      %c0_25 = arith.constant 0 : index
      %c0_26 = arith.constant 0 : index
      %41 = vector.load %arg6[%c0_24, %c0_25, %c0_26] : memref<1x8x128xf32, #tpu.memory_space<vmem>>, vector<1x8x128xf32>
      %42 = vector.shape_cast %41 : vector<1x8x128xf32> to vector<8x128xf32>
      %43 = vector.shape_cast %40 : vector<8x128xf32> to vector<1x8x128xf32>
      tpu.vector_store %arg6[%c0_24, %c0_25, %c0_26], %43 {strides = array<i32>} : memref<1x8x128xf32, #tpu.memory_space<vmem>>, vector<1x8x128xf32>,
    } else {
    }
    return
  }
  func.func @transform_0(%arg0: i32, %arg1: i32) -> (i32, i32, i32) {
    %c0_i32 = arith.constant 0 : i32
    %c0_i32_0 = arith.constant 0 : i32
    %c0_i32_1 = arith.constant 0 : i32
    return %arg0, %c0_i32, %c0_i32_0 : i32, i32, i32
  }
  func.func @transform_1(%arg0: i32, %arg1: i32) -> (i32, i32) {
    %c0_i32 = arith.constant 0 : i32
    %c0_i32_0 = arith.constant 0 : i32
    %c0_i32_1 = arith.constant 0 : i32
    return %c0_i32, %c0_i32_0 : i32, i32
  }
  func.func @transform_2(%arg0: i32, %arg1: i32) -> (i32, i32) {
    %c0_i32 = arith.constant 0 : i32
    %c0_i32_0 = arith.constant 0 : i32
    %c0_i32_1 = arith.constant 0 : i32
    return %c0_i32, %c0_i32_0 : i32, i32
  }
  func.func @transform_3(%arg0: i32, %arg1: i32) -> (i32, i32) {
    %c0_i32 = arith.constant 0 : i32
    %c0_i32_0 = arith.constant 0 : i32
    %c0_i32_1 = arith.constant 0 : i32
    return %c0_i32, %c0_i32_0 : i32, i32
  }
  func.func @transform_4(%arg0: i32, %arg1: i32) -> (i32, i32, i32) {
    %c0_i32 = arith.constant 0 : i32
    %c0_i32_0 = arith.constant 0 : i32
    %c0_i32_1 = arith.constant 0 : i32
    return %arg0, %c0_i32, %c0_i32_0 : i32, i32, i32
  }
}

</mosaic_0001>

<llo_original>
// kernel: tpu_custom_call.1
$region0: #{tpu_custom_call.1}
  #allocation0 [shape = 'u32[]', space=smem, size = 0x4, offset = 0x4, fixed_abs, tag = 'smem constant byte address 0x4 - core index']
  #allocation1 [shape = 'u32[72,128]{1,0:T(1,128)}', space=vmem, size = 0x9000, scoped, tag = 'internal scratch']
  #allocation2 [shape = 'f32[8,512]{1,0:T(8,128)}', space=vmem, size = 0x4000, scoped, tag = 'scratch operand']
  %s0 = inlined_call_operand.vmem [shape: bf16[2,288,16], index: 0, kind: input, shape index: {}]
  %s1 = inlined_call_operand.vmem [shape: bf16[48,512], index: 1, kind: input, shape index: {}]
  %s2 = inlined_call_operand.hbm [shape: f32[512,128], index: 2, kind: input, shape index: {}]
  %s3 = inlined_call_operand.vmem [shape: f32[1,128], index: 3, kind: input, shape index: {}]
  %s4 = inlined_call_operand.hbm [shape: f32[2,8,128], index: 4, kind: output, shape index: {}]
  %s5 = sld [smem:[#allocation0]]
  $region61: #{tpu_custom_call.1} parent=0
    _
  %s7 = ssub.s32 1, %s5
  %s8 = scalar_select 0, %s7, %s5
  $region1: #{tpu_custom_call.1} parent=0
    #allocation3 [shape = 'u8[262144]{0}', space=vmem, size = 0x40000, scoped, tag = 'input window, operand 2, single buffered']
    #allocation4 [shape = 's32[2]{0}', space=sflag, size = 0x8, scoped, tag = 'scoped memory for tpu_custom_call.1']
    #allocation5 [shape = 's32[2]{0}', space=sflag, size = 0x8, scoped, tag = 'scoped memory for tpu_custom_call.1']
    #allocation6 [shape = 'u8[8192]{0}', space=vmem, size = 0x2000, scoped, tag = 'output window, operand 0']
    %9 = vsyncpa [#allocation4], 0
    %10 = vsyncpa [#allocation5], 0
    %s11 = scalar_lea.sflag [#allocation5], 1
    %12 = vsyncpa %s11, 0
    loop: start=0, step=1, limit=6
    $region2: #{tpu_custom_call.1} parent=1 // loop_pre_header
      _
    $region3: #{tpu_custom_call.1} parent=1 // loop_header
      %s14 = sphi 0, %s18
      %p15 = scmp.ge.s32.totalorder %s14, 6
      %s21 = sphi 0, %s33
      %s22 = sphi 0, %s29
      %s23 = sphi 0, %s21
      %s24 = sphi 0, %s22
      %s25 = sphi 0, %s23
      %s26 = sphi 0, %s24
      %s36 = sphi 0, %s38
      %s39 = sphi 0, %s36
      %s40 = sphi 0, %s39
      %s56 = sphi 0, %s40
      %s60 = sphi 0, %s60
      %s62 = sphi 0, %s60
      %s63 = sphi 0, %s62
      %s77 = sphi 0, %s63
      %s81 = sphi 0, %s81
      %s83 = sphi 0, %s81
      %s84 = sphi 0, %s83
      %s98 = sphi 0, %s84
      %s102 = sphi 0, %s102
      %s104 = sphi 0, %s102
      %s105 = sphi 0, %s104
      %s119 = sphi 0, %s105
      %s125 = sphi 0, %s127
      %s128 = sphi 0, %s125
      %s129 = sphi 0, %s128
      %s145 = sphi 0, %s129
    $region4: #{tpu_custom_call.1} parent=1 // loop_header_branch
      %17 = sbr.rel (%p15) target = $region8
    $region5: #{tpu_custom_call.1} parent=1 // loop_body
      %s19 = ssub.s32 %s14, 1
      %s20 = ssub.s32 %s14, 2
      %s27 = sadd.s32 1, %s22
      %p28 = scmp.ge.s32.totalorder %s27, 2
      %s29 = scalar_select %p28, 0, %s27
      %s30 = sadd.s32 1, %s21
      %s31 = scalar_select %p28, %s30, %s21
      %p32 = scmp.ge.s32.totalorder %s31, 2
      %s33 = scalar_select %p32, 0, %s31
      %s34 = ssub.s32 %s21, %s33
      %p35 = scmp.eq.s32.totalorder %s34, 0
      %s37 = sadd.s32 %s36, 1
      %s38 = scalar_select %p35, %s36, %s37
      %p41 = pneg %p35
      %p42 = scmp.eq.s32.totalorder %s14, 3
      %p43 = por %p41, %p42
      %p44 = scmp.ne.s32.totalorder %s36, %s39
      %p45 = scmp.eq.s32.totalorder %s14, 0
      %p46 = por %p44, %p45
      %p47 = scmp.ne.s32.totalorder %s36, %s39
      %p48 = scmp.eq.s32.totalorder %s19, 3
      %p49 = por %p47, %p48
      %p50 = scmp.ne.s32.totalorder %s39, %s40
      %p51 = scmp.eq.s32.totalorder %s19, 0
      %p52 = por %p50, %p51
      %p53 = scmp.ne.s32.totalorder %s39, %s40
      %p54 = scmp.eq.s32.totalorder %s20, 3
      %p55 = por %p53, %p54
      %p57 = scmp.ne.s32.totalorder %s40, %s56
      %p58 = scmp.eq.s32.totalorder %s20, 0
      %p59 = por %p57, %p58
      %s61 = sadd.s32 %s60, 1
      %p64 = scmp.eq.s32.totalorder %s14, 3
      %p65 = scmp.ne.s32.totalorder %s60, %s62
      %p66 = scmp.eq.s32.totalorder %s14, 0
      %p67 = por %p65, %p66
      %p68 = scmp.ne.s32.totalorder %s60, %s62
      %p69 = scmp.eq.s32.totalorder %s19, 3
      %p70 = por %p68, %p69
      %p71 = scmp.ne.s32.totalorder %s62, %s63
      %p72 = scmp.eq.s32.totalorder %s19, 0
      %p73 = por %p71, %p72
      %p74 = scmp.ne.s32.totalorder %s62, %s63
      %p75 = scmp.eq.s32.totalorder %s20, 3
      %p76 = por %p74, %p75
      %p78 = scmp.ne.s32.totalorder %s63, %s77
      %p79 = scmp.eq.s32.totalorder %s20, 0
      %p80 = por %p78, %p79
      %s82 = sadd.s32 %s81, 1
      %p85 = scmp.eq.s32.totalorder %s14, 3
      %p86 = scmp.ne.s32.totalorder %s81, %s83
      %p87 = scmp.eq.s32.totalorder %s14, 0
      %p88 = por %p86, %p87
      %p89 = scmp.ne.s32.totalorder %s81, %s83
      %p90 = scmp.eq.s32.totalorder %s19, 3
      %p91 = por %p89, %p90
      %p92 = scmp.ne.s32.totalorder %s83, %s84
      %p93 = scmp.eq.s32.totalorder %s19, 0
      %p94 = por %p92, %p93
      %p95 = scmp.ne.s32.totalorder %s83, %s84
      %p96 = scmp.eq.s32.totalorder %s20, 3
      %p97 = por %p95, %p96
      %p99 = scmp.ne.s32.totalorder %s84, %s98
      %p100 = scmp.eq.s32.totalorder %s20, 0
      %p101 = por %p99, %p100
      %s103 = sadd.s32 %s102, 1
      %p106 = scmp.eq.s32.totalorder %s14, 3
      %p107 = scmp.ne.s32.totalorder %s102, %s104
      %p108 = scmp.eq.s32.totalorder %s14, 0
      %p109 = por %p107, %p108
      %p110 = scmp.ne.s32.totalorder %s102, %s104
      %p111 = scmp.eq.s32.totalorder %s19, 3
      %p112 = por %p110, %p111
      %p113 = scmp.ne.s32.totalorder %s104, %s105
      %p114 = scmp.eq.s32.totalorder %s19, 0
      %p115 = por %p113, %p114
      %p116 = scmp.ne.s32.totalorder %s104, %s105
      %p117 = scmp.eq.s32.totalorder %s20, 3
      %p118 = por %p116, %p117
      %p120 = scmp.ne.s32.totalorder %s105, %s119
      %p121 = scmp.eq.s32.totalorder %s20, 0
      %p122 = por %p120, %p121
      %s123 = ssub.s32 %s21, %s33
      %p124 = scmp.eq.s32.totalorder %s123, 0
      %s126 = sadd.s32 %s125, 1
      %s127 = scalar_select %p124, %s125, %s126
      %p130 = pneg %p124
      %p131 = scmp.eq.s32.totalorder %s14, 3
      %p132 = por %p130, %p131
      %p133 = scmp.ne.s32.totalorder %s125, %s128
      %p134 = scmp.eq.s32.totalorder %s14, 0
      %p135 = por %p133, %p134
      %p136 = scmp.ne.s32.totalorder %s125, %s128
      %p137 = scmp.eq.s32.totalorder %s19, 3
      %p138 = por %p136, %p137
      %p139 = scmp.ne.s32.totalorder %s128, %s129
      %p140 = scmp.eq.s32.totalorder %s19, 0
      %p141 = por %p139, %p140
      %p142 = scmp.ne.s32.totalorder %s128, %s129
      %p143 = scmp.eq.s32.totalorder %s20, 3
      %p144 = por %p142, %p143
      %p146 = scmp.ne.s32.totalorder %s129, %s145
      %p147 = scmp.eq.s32.totalorder %s20, 0
      %p148 = por %p146, %p147
      %p149 = scmp.le.s32.totalorder 1, %s14
      %p150 = scmp.lt.s32.totalorder %s14, 5
      %p151 = pnand %p149, %p150
      %p152 = pneg %p151
      // Predicated region
      $region9: #{tpu_custom_call.1} parent=5 // pred_check
        _
      $region10: #{tpu_custom_call.1} parent=5 // pred_check_branch
        %154 = sbr.rel (%p151) target = $region12
      $region11: #{tpu_custom_call.1} parent=5 // pred_region
        %s155 = ssub.s32 %s14, 1
        // Predicated region
        $region13: #{tpu_custom_call.1} parent=11 // pred_check
          %p156 = pneg %p73
        $region14: #{tpu_custom_call.1} parent=11 // pred_check_branch
          %158 = sbr.rel (%p156) target = $region16
        $region15: #{tpu_custom_call.1} parent=11 // pred_region
          _
        $region16: #{tpu_custom_call.1} parent=11 // pred_fallthru
          _
        // Predicated region
        $region17: #{tpu_custom_call.1} parent=11 // pred_check
          %p159 = pneg %p94
        $region18: #{tpu_custom_call.1} parent=11 // pred_check_branch
          %161 = sbr.rel (%p159) target = $region20
        $region19: #{tpu_custom_call.1} parent=11 // pred_region
          %163 = vsyncadd [#allocation4], 0
          %s164 = sshll.u32 %s2, 4
          %s165 = int_to_ptr.hbm [resolvable:$true] %s164
          %s166 = sshll.u32 [#allocation3], 4
          %s167 = int_to_ptr.vmem [resolvable:$true] %s166
          %172 = dma.hbm_to_vmem [thread:$0]  %s165, 8192, %s167, [#allocation4], 128, 128, 8
        $region20: #{tpu_custom_call.1} parent=11 // pred_fallthru
          _
        // Predicated region
        $region21: #{tpu_custom_call.1} parent=11 // pred_check
          %p173 = pneg %p115
        $region22: #{tpu_custom_call.1} parent=11 // pred_check_branch
          %175 = sbr.rel (%p173) target = $region24
        $region23: #{tpu_custom_call.1} parent=11 // pred_region
          _
        $region24: #{tpu_custom_call.1} parent=11 // pred_fallthru
          _
      $region12: #{tpu_custom_call.1} parent=5 // pred_fallthru
        _
      %p176 = scmp.lt.s32.totalorder %s14, 4
      // Predicated region
      $region25: #{tpu_custom_call.1} parent=5 // pred_check
        %p177 = pneg %p176
      $region26: #{tpu_custom_call.1} parent=5 // pred_check_branch
        %179 = sbr.rel (%p177) target = $region28
      $region27: #{tpu_custom_call.1} parent=5 // pred_region
        // Predicated region
        $region29: #{tpu_custom_call.1} parent=27 // pred_check
          %p180 = pneg %p46
        $region30: #{tpu_custom_call.1} parent=27 // pred_check_branch
          %182 = sbr.rel (%p180) target = $region32
        $region31: #{tpu_custom_call.1} parent=27 // pred_region
          %p183 = scmp.lt.s32.totalorder %s21, 1
          %s184 = scalar_select %p183, %s21, 1
          %s185 = smul.addr %s184, 36
          %s186 = smul.addr %s185, 4
          %s187 = scalar_lea.vmem %s0, %s186
        $region32: #{tpu_custom_call.1} parent=27 // pred_fallthru
          _
      $region28: #{tpu_custom_call.1} parent=5 // pred_fallthru
        _
      %p188 = scmp.le.s32.totalorder 1, %s14
      %p189 = scmp.lt.s32.totalorder %s14, 5
      %p190 = pnand %p188, %p189
      %p191 = pneg %p190
      // Predicated region
      $region33: #{tpu_custom_call.1} parent=5 // pred_check
        _
      $region34: #{tpu_custom_call.1} parent=5 // pred_check_branch
        %193 = sbr.rel (%p190) target = $region36
      $region35: #{tpu_custom_call.1} parent=5 // pred_region
        %s194 = ssub.s32 %s14, 1
        // Predicated region
        $region37: #{tpu_custom_call.1} parent=35 // pred_check
          %p195 = pneg %p94
        $region38: #{tpu_custom_call.1} parent=35 // pred_check_branch
          %197 = sbr.rel (%p195) target = $region40
        $region39: #{tpu_custom_call.1} parent=35 // pred_region
          %199 = dma.done [#allocation4], 8192
        $region40: #{tpu_custom_call.1} parent=35 // pred_fallthru
          _
        %p200 = scmp.lt.s32.totalorder %s23, 1
        %s201 = scalar_select %p200, %s23, 1
        %s202 = smul.addr %s201, 36
        %s203 = smul.addr %s202, 4
        %s204 = scalar_lea.vmem %s0, %s203
        %p205 = pneg %p52
        %p206 = pneg %p49
        %p207 = pneg %p73
        %p208 = pneg %p70
        %p209 = pneg %p94
        %p210 = pneg %p91
        %p211 = pneg %p115
        %p212 = pneg %p112
        %p213 = pneg %p141
        %p214 = pneg %p138
        %s215 = sand.u32 %s128, 1
        %s216 = scalar_lea.sflag [#allocation5], %s215
        %s217 = sand.u32 %s128, 1
        %s218 = smul.addr %s217, 8
        %s219 = scalar_lea.vmem [#allocation6], %s218
        %p220 = scmp.lt.s32.totalorder %s23, 1
        %s221 = scalar_select %p220, %s23, 1
        %s222 = smul.addr %s221, 36
        %s223 = smul.addr %s222, 4
        %s224 = scalar_lea.vmem %s0, %s223
        %p226 = scmp.eq.s32.totalorder %s24, 0
        // Predicated region
        $region41: #{tpu_custom_call.1} parent=35 // pred_check
          %p227 = pneg %p226
        $region42: #{tpu_custom_call.1} parent=35 // pred_check_branch
          %229 = sbr.rel (%p227) target = $region44
        $region43: #{tpu_custom_call.1} parent=35 // pred_region
          %230 = vst [vmem:[#allocation2] sm:$0xff] 0.0
          %231 = vst [vmem:[#allocation2 + $0x8] sm:$0xff] 0.0
          %232 = vst [vmem:[#allocation2 + $0x10] sm:$0xff] 0.0
          %233 = vst [vmem:[#allocation2 + $0x18] sm:$0xff] 0.0
        $region44: #{tpu_custom_call.1} parent=35 // pred_fallthru
          _
        %s234 = smul.u32 %s24, 128
        %s235 = sshra.s32 %s234, 3
        %s236 = sand.u32 %s234, 7
        %s237 = smul.addr %s235, 4
        %s238 = scalar_lea.vmem %s224, %s237
        %v239 = vld [vmem:[%s238] sm:$0xf]
        %v240 = vld [vmem:[%s238 + $0x4] sm:$0xf]
        %v241 = vld [vmem:[%s238 + $0x8] sm:$0xf]
        %v242 = vld [vmem:[%s238 + $0xc] sm:$0xf]
        %v243 = vld [vmem:[%s238 + $0x10] sm:$0xf]
        %v244 = vld [vmem:[%s238 + $0x14] sm:$0xf]
        %v245 = vld [vmem:[%s238 + $0x18] sm:$0xf]
        %v246 = vld [vmem:[%s238 + $0x1c] sm:$0xf]
        %v247 = vld [vmem:[%s238 + $0x20] sm:$0xf]
        %v248 = vld [vmem:[%s238 + $0x24] sm:$0xf]
        %v249 = vld [vmem:[%s238 + $0x28] sm:$0xf]
        %v250 = vld [vmem:[%s238 + $0x2c] sm:$0xf]
        %v251 = vld [vmem:[%s238 + $0x30] sm:$0xf]
        %v252 = vld [vmem:[%s238 + $0x34] sm:$0xf]
        %v253 = vld [vmem:[%s238 + $0x38] sm:$0xf]
        %v254 = vld [vmem:[%s238 + $0x3c] sm:$0xf]
        %s255 = sadd.s32 %s234, 16
        %s256 = sshra.s32 %s255, 3
        %s257 = sand.u32 %s255, 7
        %s258 = smul.addr %s256, 4
        %s259 = scalar_lea.vmem %s224, %s258
        %v260 = vld [vmem:[%s259] sm:$0xf]
        %v261 = vld [vmem:[%s259 + $0x4] sm:$0xf]
        %v262 = vld [vmem:[%s259 + $0x8] sm:$0xf]
        %v263 = vld [vmem:[%s259 + $0xc] sm:$0xf]
        %v264 = vld [vmem:[%s259 + $0x10] sm:$0xf]
        %v265 = vld [vmem:[%s259 + $0x14] sm:$0xf]
        %v266 = vld [vmem:[%s259 + $0x18] sm:$0xf]
        %v267 = vld [vmem:[%s259 + $0x1c] sm:$0xf]
        %v268 = vld [vmem:[%s259 + $0x20] sm:$0xf]
        %v269 = vld [vmem:[%s259 + $0x24] sm:$0xf]
        %v270 = vld [vmem:[%s259 + $0x28] sm:$0xf]
        %v271 = vld [vmem:[%s259 + $0x2c] sm:$0xf]
        %v272 = vld [vmem:[%s259 + $0x30] sm:$0xf]
        %v273 = vld [vmem:[%s259 + $0x34] sm:$0xf]
        %v274 = vld [vmem:[%s259 + $0x38] sm:$0xf]
        %v275 = vld [vmem:[%s259 + $0x3c] sm:$0xf]
        %s276 = sadd.s32 %s234, 32
        %s277 = sshra.s32 %s276, 3
        %s278 = sand.u32 %s276, 7
        %s279 = smul.addr %s277, 4
        %s280 = scalar_lea.vmem %s224, %s279
        %v281 = vld [vmem:[%s280] sm:$0xf]
        %v282 = vld [vmem:[%s280 + $0x4] sm:$0xf]
        %v283 = vld [vmem:[%s280 + $0x8] sm:$0xf]
        %v284 = vld [vmem:[%s280 + $0xc] sm:$0xf]
        %v285 = vld [vmem:[%s280 + $0x10] sm:$0xf]
        %v286 = vld [vmem:[%s280 + $0x14] sm:$0xf]
        %v287 = vld [vmem:[%s280 + $0x18] sm:$0xf]
        %v288 = vld [vmem:[%s280 + $0x1c] sm:$0xf]
        %v289 = vld [vmem:[%s280 + $0x20] sm:$0xf]
        %v290 = vld [vmem:[%s280 + $0x24] sm:$0xf]
        %v291 = vld [vmem:[%s280 + $0x28] sm:$0xf]
        %v292 = vld [vmem:[%s280 + $0x2c] sm:$0xf]
        %v293 = vld [vmem:[%s280 + $0x30] sm:$0xf]
        %v294 = vld [vmem:[%s280 + $0x34] sm:$0xf]
        %v295 = vld [vmem:[%s280 + $0x38] sm:$0xf]
        %v296 = vld [vmem:[%s280 + $0x3c] sm:$0xf]
        %v313 = vunpack.c.l.b16 %v239
        %v314 = vunpack.c.l.b16 %v240
        %v315 = vunpack.c.l.b16 %v241
        %v316 = vunpack.c.l.b16 %v242
        %v317 = vunpack.c.l.b16 %v243
        %v318 = vunpack.c.l.b16 %v244
        %v319 = vunpack.c.l.b16 %v245
        %v320 = vunpack.c.l.b16 %v246
        %v321 = vunpack.c.l.b16 %v247
        %v322 = vunpack.c.l.b16 %v248
        %v323 = vunpack.c.l.b16 %v249
        %v324 = vunpack.c.l.b16 %v250
        %v325 = vunpack.c.l.b16 %v251
        %v326 = vunpack.c.l.b16 %v252
        %v327 = vunpack.c.l.b16 %v253
        %v328 = vunpack.c.l.b16 %v254
        %v329 = vpack.c.b16 %v314, %v313
        %v330 = vpack.c.b16 %v316, %v315
        %v331 = vpack.c.b16 %v318, %v317
        %v332 = vpack.c.b16 %v320, %v319
        %v333 = vpack.c.b16 %v322, %v321
        %v334 = vpack.c.b16 %v324, %v323
        %v335 = vpack.c.b16 %v326, %v325
        %v336 = vpack.c.b16 %v328, %v327
        %v353 = vunpack.c.l.b16 %v260
        %v354 = vunpack.c.l.b16 %v261
        %v355 = vunpack.c.l.b16 %v262
        %v356 = vunpack.c.l.b16 %v263
        %v357 = vunpack.c.l.b16 %v264
        %v358 = vunpack.c.l.b16 %v265
        %v359 = vunpack.c.l.b16 %v266
        %v360 = vunpack.c.l.b16 %v267
        %v361 = vunpack.c.l.b16 %v268
        %v362 = vunpack.c.l.b16 %v269
        %v363 = vunpack.c.l.b16 %v270
        %v364 = vunpack.c.l.b16 %v271
        %v365 = vunpack.c.l.b16 %v272
        %v366 = vunpack.c.l.b16 %v273
        %v367 = vunpack.c.l.b16 %v274
        %v368 = vunpack.c.l.b16 %v275
        %v369 = vpack.c.b16 %v354, %v353
        %v370 = vpack.c.b16 %v356, %v355
        %v371 = vpack.c.b16 %v358, %v357
        %v372 = vpack.c.b16 %v360, %v359
        %v373 = vpack.c.b16 %v362, %v361
        %v374 = vpack.c.b16 %v364, %v363
        %v375 = vpack.c.b16 %v366, %v365
        %v376 = vpack.c.b16 %v368, %v367
        %377 = vrot.lane.b32.xlu0 %v369, 16
        %v378 = vpop.permute.xlu0 %377
        %379 = vrot.lane.b32.xlu0 %v370, 16
        %v380 = vpop.permute.xlu0 %379
        %381 = vrot.lane.b32.xlu0 %v371, 16
        %v382 = vpop.permute.xlu0 %381
        %383 = vrot.lane.b32.xlu0 %v372, 16
        %v384 = vpop.permute.xlu0 %383
        %385 = vrot.lane.b32.xlu0 %v373, 16
        %v386 = vpop.permute.xlu0 %385
        %387 = vrot.lane.b32.xlu0 %v374, 16
        %v388 = vpop.permute.xlu0 %387
        %389 = vrot.lane.b32.xlu0 %v375, 16
        %v390 = vpop.permute.xlu0 %389
        %391 = vrot.lane.b32.xlu0 %v376, 16
        %v392 = vpop.permute.xlu0 %391
        %v409 = vunpack.c.l.b16 %v281
        %v410 = vunpack.c.l.b16 %v282
        %v411 = vunpack.c.l.b16 %v283
        %v412 = vunpack.c.l.b16 %v284
        %v413 = vunpack.c.l.b16 %v285
        %v414 = vunpack.c.l.b16 %v286
        %v415 = vunpack.c.l.b16 %v287
        %v416 = vunpack.c.l.b16 %v288
        %v417 = vunpack.c.l.b16 %v289
        %v418 = vunpack.c.l.b16 %v290
        %v419 = vunpack.c.l.b16 %v291
        %v420 = vunpack.c.l.b16 %v292
        %v421 = vunpack.c.l.b16 %v293
        %v422 = vunpack.c.l.b16 %v294
        %v423 = vunpack.c.l.b16 %v295
        %v424 = vunpack.c.l.b16 %v296
        %v425 = vpack.c.b16 %v410, %v409
        %v426 = vpack.c.b16 %v412, %v411
        %v427 = vpack.c.b16 %v414, %v413
        %v428 = vpack.c.b16 %v416, %v415
        %v429 = vpack.c.b16 %v418, %v417
        %v430 = vpack.c.b16 %v420, %v419
        %v431 = vpack.c.b16 %v422, %v421
        %v432 = vpack.c.b16 %v424, %v423
        %433 = vrot.lane.b32.xlu0 %v425, 32
        %v434 = vpop.permute.xlu0 %433
        %435 = vrot.lane.b32.xlu0 %v426, 32
        %v436 = vpop.permute.xlu0 %435
        %437 = vrot.lane.b32.xlu0 %v427, 32
        %v438 = vpop.permute.xlu0 %437
        %439 = vrot.lane.b32.xlu0 %v428, 32
        %v440 = vpop.permute.xlu0 %439
        %441 = vrot.lane.b32.xlu0 %v429, 32
        %v442 = vpop.permute.xlu0 %441
        %443 = vrot.lane.b32.xlu0 %v430, 32
        %v444 = vpop.permute.xlu0 %443
        %445 = vrot.lane.b32.xlu0 %v431, 32
        %v446 = vpop.permute.xlu0 %445
        %447 = vrot.lane.b32.xlu0 %v432, 32
        %v448 = vpop.permute.xlu0 %447
        %vm449 = vcmask 130048
        %v452 = vsel %vm449, %v329, %v378
        %v455 = vsel %vm449, %v330, %v380
        %v458 = vsel %vm449, %v331, %v382
        %v461 = vsel %vm449, %v332, %v384
        %v464 = vsel %vm449, %v333, %v386
        %v467 = vsel %vm449, %v334, %v388
        %v470 = vsel %vm449, %v335, %v390
        %v473 = vsel %vm449, %v336, %v392
        %vm474 = vcmask 261120
        %v476 = vsel %vm474, %v452, %v434
        %v478 = vsel %vm474, %v455, %v436
        %v480 = vsel %vm474, %v458, %v438
        %v482 = vsel %vm474, %v461, %v440
        %v484 = vsel %vm474, %v464, %v442
        %v486 = vsel %vm474, %v467, %v444
        %v488 = vsel %vm474, %v470, %v446
        %v490 = vsel %vm474, %v473, %v448
        %v491 = vld [vmem:[%s1] sm:$0xff]
        %v492 = vld [vmem:[%s1 + $0x8] sm:$0xff]
        %v493 = vld [vmem:[%s1 + $0x10] sm:$0xff]
        %v494 = vld [vmem:[%s1 + $0x18] sm:$0xff]
        %v495 = vld [vmem:[%s1 + $0x20] sm:$0xff]
        %v496 = vld [vmem:[%s1 + $0x28] sm:$0xff]
        %v497 = vld [vmem:[%s1 + $0x30] sm:$0xff]
        %v498 = vld [vmem:[%s1 + $0x38] sm:$0xff]
        %v499 = vld [vmem:[%s1 + $0x40] sm:$0xff]
        %v500 = vld [vmem:[%s1 + $0x48] sm:$0xff]
        %v501 = vld [vmem:[%s1 + $0x50] sm:$0xff]
        %v502 = vld [vmem:[%s1 + $0x58] sm:$0xff]
        %v515 = vunpack.c.l.b16 %v491
        %v516 = vunpack.c.h.b16 %v491
        %v517 = vunpack.c.l.b16 %v492
        %v518 = vunpack.c.h.b16 %v492
        %v519 = vunpack.c.l.b16 %v493
        %v520 = vunpack.c.h.b16 %v493
        %v521 = vunpack.c.l.b16 %v494
        %v522 = vunpack.c.h.b16 %v494
        %v523 = vunpack.c.l.b16 %v495
        %v524 = vunpack.c.h.b16 %v495
        %v525 = vunpack.c.l.b16 %v496
        %v526 = vunpack.c.h.b16 %v496
        %v527 = vunpack.c.l.b16 %v497
        %v528 = vunpack.c.h.b16 %v497
        %v529 = vunpack.c.l.b16 %v498
        %v530 = vunpack.c.h.b16 %v498
        %v531 = vunpack.c.l.b16 %v499
        %v532 = vunpack.c.h.b16 %v499
        %v533 = vunpack.c.l.b16 %v500
        %v534 = vunpack.c.h.b16 %v500
        %v535 = vunpack.c.l.b16 %v501
        %v536 = vunpack.c.h.b16 %v501
        %v537 = vunpack.c.l.b16 %v502
        %v538 = vunpack.c.h.b16 %v502
        %v539 = vpack.c.b16 %v519, %v515
        %v540 = vpack.c.b16 %v520, %v516
        %v541 = vpack.c.b16 %v521, %v517
        %v542 = vpack.c.b16 %v522, %v518
        %v543 = vpack.c.b16 %v527, %v523
        %v544 = vpack.c.b16 %v528, %v524
        %v545 = vpack.c.b16 %v529, %v525
        %v546 = vpack.c.b16 %v530, %v526
        %v547 = vpack.c.b16 %v535, %v531
        %v548 = vpack.c.b16 %v536, %v532
        %v549 = vpack.c.b16 %v537, %v533
        %v550 = vpack.c.b16 %v538, %v534
        %vm563 = vcmask 392192
        %v564 = vsel %vm563, %v476, 0
        %v566 = vsel %vm563, %v478, 0
        %v568 = vsel %vm563, %v480, 0
        %v570 = vsel %vm563, %v482, 0
        %v572 = vsel %vm563, %v484, 0
        %v574 = vsel %vm563, %v486, 0
        %v576 = vsel %vm563, %v488, 0
        %v578 = vsel %vm563, %v490, 0
        %580 = vmatpush.bf16.msra.mxu0 0
        %581 = vmatpush.bf16.msra.mxu0 0
        %582 = vmatpush.bf16.msra.mxu0 0
        %583 = vmatpush.bf16.msra.mxu0 0
        %584 = vmatpush.bf16.msra.mxu0 0
        %585 = vmatpush.bf16.msra.mxu0 %v547
        %586 = vmatpush.bf16.msra.mxu0 %v543
        %587 = vmatpush.bf16.msra.mxu0 %v539
        %588 = vmatmul.bf16.gmra.mxu0 %v564
        %v589 = vpop.f32.mrf.mxu0
        %v590 = vadd.f32 0.0, %v589
        %v591 = vpop.f32.mrf.mxu0
        %v592 = vadd.f32 0.0, %v591
        %593 = vmatmul.bf16.gmra.mxu0 %v566
        %v594 = vpop.f32.mrf.mxu0
        %v595 = vadd.f32 0.0, %v594
        %v596 = vpop.f32.mrf.mxu0
        %v597 = vadd.f32 0.0, %v596
        %598 = vmatmul.bf16.gmra.mxu0 %v568
        %v599 = vpop.f32.mrf.mxu0
        %v600 = vadd.f32 0.0, %v599
        %v601 = vpop.f32.mrf.mxu0
        %v602 = vadd.f32 0.0, %v601
        %603 = vmatmul.bf16.gmra.mxu0 %v570
        %v604 = vpop.f32.mrf.mxu0
        %v605 = vadd.f32 0.0, %v604
        %v606 = vpop.f32.mrf.mxu0
        %v607 = vadd.f32 0.0, %v606
        %608 = vmatmul.bf16.gmra.mxu0 %v572
        %v609 = vpop.f32.mrf.mxu0
        %v610 = vadd.f32 0.0, %v609
        %v611 = vpop.f32.mrf.mxu0
        %v612 = vadd.f32 0.0, %v611
        %613 = vmatmul.bf16.gmra.mxu0 %v574
        %v614 = vpop.f32.mrf.mxu0
        %v615 = vadd.f32 0.0, %v614
        %v616 = vpop.f32.mrf.mxu0
        %v617 = vadd.f32 0.0, %v616
        %618 = vmatmul.bf16.gmra.mxu0 %v576
        %v619 = vpop.f32.mrf.mxu0
        %v620 = vadd.f32 0.0, %v619
        %v621 = vpop.f32.mrf.mxu0
        %v622 = vadd.f32 0.0, %v621
        %623 = vmatmul.bf16.gmra.mxu0 %v578
        %v624 = vpop.f32.mrf.mxu0
        %v625 = vadd.f32 0.0, %v624
        %v626 = vpop.f32.mrf.mxu0
        %v627 = vadd.f32 0.0, %v626
        %628 = vdwg.mxu0
        %629 = vmatpush.bf16.msra.mxu0 0
        %630 = vmatpush.bf16.msra.mxu0 0
        %631 = vmatpush.bf16.msra.mxu0 0
        %632 = vmatpush.bf16.msra.mxu0 0
        %633 = vmatpush.bf16.msra.mxu0 0
        %634 = vmatpush.bf16.msra.mxu0 %v548
        %635 = vmatpush.bf16.msra.mxu0 %v544
        %636 = vmatpush.bf16.msra.mxu0 %v540
        %637 = vmatmul.bf16.gmra.mxu0 %v564
        %v638 = vpop.f32.mrf.mxu0
        %v639 = vadd.f32 0.0, %v638
        %v640 = vpop.f32.mrf.mxu0
        %v641 = vadd.f32 0.0, %v640
        %642 = vmatmul.bf16.gmra.mxu0 %v566
        %v643 = vpop.f32.mrf.mxu0
        %v644 = vadd.f32 0.0, %v643
        %v645 = vpop.f32.mrf.mxu0
        %v646 = vadd.f32 0.0, %v645
        %647 = vmatmul.bf16.gmra.mxu0 %v568
        %v648 = vpop.f32.mrf.mxu0
        %v649 = vadd.f32 0.0, %v648
        %v650 = vpop.f32.mrf.mxu0
        %v651 = vadd.f32 0.0, %v650
        %652 = vmatmul.bf16.gmra.mxu0 %v570
        %v653 = vpop.f32.mrf.mxu0
        %v654 = vadd.f32 0.0, %v653
        %v655 = vpop.f32.mrf.mxu0
        %v656 = vadd.f32 0.0, %v655
        %657 = vmatmul.bf16.gmra.mxu0 %v572
        %v658 = vpop.f32.mrf.mxu0
        %v659 = vadd.f32 0.0, %v658
        %v660 = vpop.f32.mrf.mxu0
        %v661 = vadd.f32 0.0, %v660
        %662 = vmatmul.bf16.gmra.mxu0 %v574
        %v663 = vpop.f32.mrf.mxu0
        %v664 = vadd.f32 0.0, %v663
        %v665 = vpop.f32.mrf.mxu0
        %v666 = vadd.f32 0.0, %v665
        %667 = vmatmul.bf16.gmra.mxu0 %v576
        %v668 = vpop.f32.mrf.mxu0
        %v669 = vadd.f32 0.0, %v668
        %v670 = vpop.f32.mrf.mxu0
        %v671 = vadd.f32 0.0, %v670
        %672 = vmatmul.bf16.gmra.mxu0 %v578
        %v673 = vpop.f32.mrf.mxu0
        %v674 = vadd.f32 0.0, %v673
        %v675 = vpop.f32.mrf.mxu0
        %v676 = vadd.f32 0.0, %v675
        %677 = vdwg.mxu0
        %678 = vmatpush.bf16.msra.mxu0 0
        %679 = vmatpush.bf16.msra.mxu0 0
        %680 = vmatpush.bf16.msra.mxu0 0
        %681 = vmatpush.bf16.msra.mxu0 0
        %682 = vmatpush.bf16.msra.mxu0 0
        %683 = vmatpush.bf16.msra.mxu0 %v549
        %684 = vmatpush.bf16.msra.mxu0 %v545
        %685 = vmatpush.bf16.msra.mxu0 %v541
        %686 = vmatmul.bf16.gmra.mxu0 %v564
        %v687 = vpop.f32.mrf.mxu0
        %v688 = vadd.f32 0.0, %v687
        %v689 = vpop.f32.mrf.mxu0
        %v690 = vadd.f32 0.0, %v689
        %691 = vmatmul.bf16.gmra.mxu0 %v566
        %v692 = vpop.f32.mrf.mxu0
        %v693 = vadd.f32 0.0, %v692
        %v694 = vpop.f32.mrf.mxu0
        %v695 = vadd.f32 0.0, %v694
        %696 = vmatmul.bf16.gmra.mxu0 %v568
        %v697 = vpop.f32.mrf.mxu0
        %v698 = vadd.f32 0.0, %v697
        %v699 = vpop.f32.mrf.mxu0
        %v700 = vadd.f32 0.0, %v699
        %701 = vmatmul.bf16.gmra.mxu0 %v570
        %v702 = vpop.f32.mrf.mxu0
        %v703 = vadd.f32 0.0, %v702
        %v704 = vpop.f32.mrf.mxu0
        %v705 = vadd.f32 0.0, %v704
        %706 = vmatmul.bf16.gmra.mxu0 %v572
        %v707 = vpop.f32.mrf.mxu0
        %v708 = vadd.f32 0.0, %v707
        %v709 = vpop.f32.mrf.mxu0
        %v710 = vadd.f32 0.0, %v709
        %711 = vmatmul.bf16.gmra.mxu0 %v574
        %v712 = vpop.f32.mrf.mxu0
        %v713 = vadd.f32 0.0, %v712
        %v714 = vpop.f32.mrf.mxu0
        %v715 = vadd.f32 0.0, %v714
        %716 = vmatmul.bf16.gmra.mxu0 %v576
        %v717 = vpop.f32.mrf.mxu0
        %v718 = vadd.f32 0.0, %v717
        %v719 = vpop.f32.mrf.mxu0
        %v720 = vadd.f32 0.0, %v719
        %721 = vmatmul.bf16.gmra.mxu0 %v578
        %v722 = vpop.f32.mrf.mxu0
        %v723 = vadd.f32 0.0, %v722
        %v724 = vpop.f32.mrf.mxu0
        %v725 = vadd.f32 0.0, %v724
        %726 = vdwg.mxu0
        %727 = vmatpush.bf16.msra.mxu0 0
        %728 = vmatpush.bf16.msra.mxu0 0
        %729 = vmatpush.bf16.msra.mxu0 0
        %730 = vmatpush.bf16.msra.mxu0 0
        %731 = vmatpush.bf16.msra.mxu0 0
        %732 = vmatpush.bf16.msra.mxu0 %v550
        %733 = vmatpush.bf16.msra.mxu0 %v546
        %734 = vmatpush.bf16.msra.mxu0 %v542
        %735 = vmatmul.bf16.gmra.mxu0 %v564
        %v736 = vpop.f32.mrf.mxu0
        %v737 = vadd.f32 0.0, %v736
        %v738 = vpop.f32.mrf.mxu0
        %v739 = vadd.f32 0.0, %v738
        %740 = vmatmul.bf16.gmra.mxu0 %v566
        %v741 = vpop.f32.mrf.mxu0
        %v742 = vadd.f32 0.0, %v741
        %v743 = vpop.f32.mrf.mxu0
        %v744 = vadd.f32 0.0, %v743
        %745 = vmatmul.bf16.gmra.mxu0 %v568
        %v746 = vpop.f32.mrf.mxu0
        %v747 = vadd.f32 0.0, %v746
        %v748 = vpop.f32.mrf.mxu0
        %v749 = vadd.f32 0.0, %v748
        %750 = vmatmul.bf16.gmra.mxu0 %v570
        %v751 = vpop.f32.mrf.mxu0
        %v752 = vadd.f32 0.0, %v751
        %v753 = vpop.f32.mrf.mxu0
        %v754 = vadd.f32 0.0, %v753
        %755 = vmatmul.bf16.gmra.mxu0 %v572
        %v756 = vpop.f32.mrf.mxu0
        %v757 = vadd.f32 0.0, %v756
        %v758 = vpop.f32.mrf.mxu0
        %v759 = vadd.f32 0.0, %v758
        %760 = vmatmul.bf16.gmra.mxu0 %v574
        %v761 = vpop.f32.mrf.mxu0
        %v762 = vadd.f32 0.0, %v761
        %v763 = vpop.f32.mrf.mxu0
        %v764 = vadd.f32 0.0, %v763
        %765 = vmatmul.bf16.gmra.mxu0 %v576
        %v766 = vpop.f32.mrf.mxu0
        %v767 = vadd.f32 0.0, %v766
        %v768 = vpop.f32.mrf.mxu0
        %v769 = vadd.f32 0.0, %v768
        %770 = vmatmul.bf16.gmra.mxu0 %v578
        %v771 = vpop.f32.mrf.mxu0
        %v772 = vadd.f32 0.0, %v771
        %v773 = vpop.f32.mrf.mxu0
        %v774 = vadd.f32 0.0, %v773
        %775 = vdwg.mxu0
        %v776 = vmax.f32 %v590, 0.0
        %v777 = vmax.f32 %v639, 0.0
        %v778 = vmax.f32 %v688, 0.0
        %v779 = vmax.f32 %v737, 0.0
        %v780 = vmax.f32 %v592, 0.0
        %v781 = vmax.f32 %v641, 0.0
        %v782 = vmax.f32 %v690, 0.0
        %v783 = vmax.f32 %v739, 0.0
        %v784 = vmax.f32 %v595, 0.0
        %v785 = vmax.f32 %v644, 0.0
        %v786 = vmax.f32 %v693, 0.0
        %v787 = vmax.f32 %v742, 0.0
        %v788 = vmax.f32 %v597, 0.0
        %v789 = vmax.f32 %v646, 0.0
        %v790 = vmax.f32 %v695, 0.0
        %v791 = vmax.f32 %v744, 0.0
        %v792 = vmax.f32 %v600, 0.0
        %v793 = vmax.f32 %v649, 0.0
        %v794 = vmax.f32 %v698, 0.0
        %v795 = vmax.f32 %v747, 0.0
        %v796 = vmax.f32 %v602, 0.0
        %v797 = vmax.f32 %v651, 0.0
        %v798 = vmax.f32 %v700, 0.0
        %v799 = vmax.f32 %v749, 0.0
        %v800 = vmax.f32 %v605, 0.0
        %v801 = vmax.f32 %v654, 0.0
        %v802 = vmax.f32 %v703, 0.0
        %v803 = vmax.f32 %v752, 0.0
        %v804 = vmax.f32 %v607, 0.0
        %v805 = vmax.f32 %v656, 0.0
        %v806 = vmax.f32 %v705, 0.0
        %v807 = vmax.f32 %v754, 0.0
        %v808 = vmax.f32 %v610, 0.0
        %v809 = vmax.f32 %v659, 0.0
        %v810 = vmax.f32 %v708, 0.0
        %v811 = vmax.f32 %v757, 0.0
        %v812 = vmax.f32 %v612, 0.0
        %v813 = vmax.f32 %v661, 0.0
        %v814 = vmax.f32 %v710, 0.0
        %v815 = vmax.f32 %v759, 0.0
        %v816 = vmax.f32 %v615, 0.0
        %v817 = vmax.f32 %v664, 0.0
        %v818 = vmax.f32 %v713, 0.0
        %v819 = vmax.f32 %v762, 0.0
        %v820 = vmax.f32 %v617, 0.0
        %v821 = vmax.f32 %v666, 0.0
        %v822 = vmax.f32 %v715, 0.0
        %v823 = vmax.f32 %v764, 0.0
        %v824 = vmax.f32 %v620, 0.0
        %v825 = vmax.f32 %v669, 0.0
        %v826 = vmax.f32 %v718, 0.0
        %v827 = vmax.f32 %v767, 0.0
        %v828 = vmax.f32 %v622, 0.0
        %v829 = vmax.f32 %v671, 0.0
        %v830 = vmax.f32 %v720, 0.0
        %v831 = vmax.f32 %v769, 0.0
        %v832 = vmax.f32 %v625, 0.0
        %v833 = vmax.f32 %v674, 0.0
        %v834 = vmax.f32 %v723, 0.0
        %v835 = vmax.f32 %v772, 0.0
        %v836 = vmax.f32 %v627, 0.0
        %v837 = vmax.f32 %v676, 0.0
        %v838 = vmax.f32 %v725, 0.0
        %v839 = vmax.f32 %v774, 0.0
        %v840 = vld [vmem:[#allocation2] sm:$0xff]
        %v841 = vld [vmem:[#allocation2 + $0x8] sm:$0xff]
        %v842 = vld [vmem:[#allocation2 + $0x10] sm:$0xff]
        %v843 = vld [vmem:[#allocation2 + $0x18] sm:$0xff]
        %v844 = vadd.f32 %v776, %v780
        %v845 = vadd.f32 %v844, %v784
        %v846 = vadd.f32 %v845, %v788
        %v847 = vadd.f32 %v846, %v792
        %v848 = vadd.f32 %v847, %v796
        %v849 = vadd.f32 %v848, %v800
        %v850 = vadd.f32 %v849, %v804
        %v851 = vadd.f32 %v850, %v808
        %v852 = vadd.f32 %v851, %v812
        %v853 = vadd.f32 %v852, %v816
        %v854 = vadd.f32 %v853, %v820
        %v855 = vadd.f32 %v854, %v824
        %v856 = vadd.f32 %v855, %v828
        %v857 = vadd.f32 %v856, %v832
        %v858 = vadd.f32 %v857, %v836
        %v859 = vadd.f32 %v777, %v781
        %v860 = vadd.f32 %v859, %v785
        %v861 = vadd.f32 %v860, %v789
        %v862 = vadd.f32 %v861, %v793
        %v863 = vadd.f32 %v862, %v797
        %v864 = vadd.f32 %v863, %v801
        %v865 = vadd.f32 %v864, %v805
        %v866 = vadd.f32 %v865, %v809
        %v867 = vadd.f32 %v866, %v813
        %v868 = vadd.f32 %v867, %v817
        %v869 = vadd.f32 %v868, %v821
        %v870 = vadd.f32 %v869, %v825
        %v871 = vadd.f32 %v870, %v829
        %v872 = vadd.f32 %v871, %v833
        %v873 = vadd.f32 %v872, %v837
        %v874 = vadd.f32 %v778, %v782
        %v875 = vadd.f32 %v874, %v786
        %v876 = vadd.f32 %v875, %v790
        %v877 = vadd.f32 %v876, %v794
        %v878 = vadd.f32 %v877, %v798
        %v879 = vadd.f32 %v878, %v802
        %v880 = vadd.f32 %v879, %v806
        %v881 = vadd.f32 %v880, %v810
        %v882 = vadd.f32 %v881, %v814
        %v883 = vadd.f32 %v882, %v818
        %v884 = vadd.f32 %v883, %v822
        %v885 = vadd.f32 %v884, %v826
        %v886 = vadd.f32 %v885, %v830
        %v887 = vadd.f32 %v886, %v834
        %v888 = vadd.f32 %v887, %v838
        %v889 = vadd.f32 %v779, %v783
        %v890 = vadd.f32 %v889, %v787
        %v891 = vadd.f32 %v890, %v791
        %v892 = vadd.f32 %v891, %v795
        %v893 = vadd.f32 %v892, %v799
        %v894 = vadd.f32 %v893, %v803
        %v895 = vadd.f32 %v894, %v807
        %v896 = vadd.f32 %v895, %v811
        %v897 = vadd.f32 %v896, %v815
        %v898 = vadd.f32 %v897, %v819
        %v899 = vadd.f32 %v898, %v823
        %v900 = vadd.f32 %v899, %v827
        %v901 = vadd.f32 %v900, %v831
        %v902 = vadd.f32 %v901, %v835
        %v903 = vadd.f32 %v902, %v839
        %v904 = vadd.f32 %v840, %v858
        %v905 = vadd.f32 %v841, %v873
        %v906 = vadd.f32 %v842, %v888
        %v907 = vadd.f32 %v843, %v903
        %908 = vst [vmem:[#allocation2] sm:$0xff] %v904
        %909 = vst [vmem:[#allocation2 + $0x8] sm:$0xff] %v905
        %910 = vst [vmem:[#allocation2 + $0x10] sm:$0xff] %v906
        %911 = vst [vmem:[#allocation2 + $0x18] sm:$0xff] %v907
        %p912 = scmp.eq.s32.totalorder %s24, 1
        // Predicated region
        $region45: #{tpu_custom_call.1} parent=35 // pred_check
          %p913 = pneg %p912
        $region46: #{tpu_custom_call.1} parent=35 // pred_check_branch
          %915 = sbr.rel (%p913) target = $region48
        $region47: #{tpu_custom_call.1} parent=35 // pred_region
          %v916 = vld [vmem:[#allocation2] sm:$0xff]
          %v917 = vld [vmem:[#allocation2 + $0x8] sm:$0xff]
          %v918 = vld [vmem:[#allocation2 + $0x10] sm:$0xff]
          %v919 = vld [vmem:[#allocation2 + $0x18] sm:$0xff]
          %v920 = vld [vmem:[#allocation3] sm:$0xff]
          %v921 = vld [vmem:[#allocation3 + $0x8] sm:$0xff]
          %v922 = vld [vmem:[#allocation3 + $0x10] sm:$0xff]
          %v923 = vld [vmem:[#allocation3 + $0x18] sm:$0xff]
          %v924 = vld [vmem:[#allocation3 + $0x20] sm:$0xff]
          %v925 = vld [vmem:[#allocation3 + $0x28] sm:$0xff]
          %v926 = vld [vmem:[#allocation3 + $0x30] sm:$0xff]
          %v927 = vld [vmem:[#allocation3 + $0x38] sm:$0xff]
          %v928 = vld [vmem:[#allocation3 + $0x40] sm:$0xff]
          %v929 = vld [vmem:[#allocation3 + $0x48] sm:$0xff]
          %v930 = vld [vmem:[#allocation3 + $0x50] sm:$0xff]
          %v931 = vld [vmem:[#allocation3 + $0x58] sm:$0xff]
          %v932 = vld [vmem:[#allocation3 + $0x60] sm:$0xff]
          %v933 = vld [vmem:[#allocation3 + $0x68] sm:$0xff]
          %v934 = vld [vmem:[#allocation3 + $0x70] sm:$0xff]
          %v935 = vld [vmem:[#allocation3 + $0x78] sm:$0xff]
          %v936 = vld [vmem:[#allocation3 + $0x80] sm:$0xff]
          %v937 = vld [vmem:[#allocation3 + $0x88] sm:$0xff]
          %v938 = vld [vmem:[#allocation3 + $0x90] sm:$0xff]
          %v939 = vld [vmem:[#allocation3 + $0x98] sm:$0xff]
          %v940 = vld [vmem:[#allocation3 + $0xa0] sm:$0xff]
          %v941 = vld [vmem:[#allocation3 + $0xa8] sm:$0xff]
          %v942 = vld [vmem:[#allocation3 + $0xb0] sm:$0xff]
          %v943 = vld [vmem:[#allocation3 + $0xb8] sm:$0xff]
          %v944 = vld [vmem:[#allocation3 + $0xc0] sm:$0xff]
          %v945 = vld [vmem:[#allocation3 + $0xc8] sm:$0xff]
          %v946 = vld [vmem:[#allocation3 + $0xd0] sm:$0xff]
          %v947 = vld [vmem:[#allocation3 + $0xd8] sm:$0xff]
          %v948 = vld [vmem:[#allocation3 + $0xe0] sm:$0xff]
          %v949 = vld [vmem:[#allocation3 + $0xe8] sm:$0xff]
          %v950 = vld [vmem:[#allocation3 + $0xf0] sm:$0xff]
          %v951 = vld [vmem:[#allocation3 + $0xf8] sm:$0xff]
          %v952 = vld [vmem:[#allocation3 + $0x100] sm:$0xff]
          %v953 = vld [vmem:[#allocation3 + $0x108] sm:$0xff]
          %v954 = vld [vmem:[#allocation3 + $0x110] sm:$0xff]
          %v955 = vld [vmem:[#allocation3 + $0x118] sm:$0xff]
          %v956 = vld [vmem:[#allocation3 + $0x120] sm:$0xff]
          %v957 = vld [vmem:[#allocation3 + $0x128] sm:$0xff]
          %v958 = vld [vmem:[#allocation3 + $0x130] sm:$0xff]
          %v959 = vld [vmem:[#allocation3 + $0x138] sm:$0xff]
          %v960 = vld [vmem:[#allocation3 + $0x140] sm:$0xff]
          %v961 = vld [vmem:[#allocation3 + $0x148] sm:$0xff]
          %v962 = vld [vmem:[#allocation3 + $0x150] sm:$0xff]
          %v963 = vld [vmem:[#allocation3 + $0x158] sm:$0xff]
          %v964 = vld [vmem:[#allocation3 + $0x160] sm:$0xff]
          %v965 = vld [vmem:[#allocation3 + $0x168] sm:$0xff]
          %v966 = vld [vmem:[#allocation3 + $0x170] sm:$0xff]
          %v967 = vld [vmem:[#allocation3 + $0x178] sm:$0xff]
          %v968 = vld [vmem:[#allocation3 + $0x180] sm:$0xff]
          %v969 = vld [vmem:[#allocation3 + $0x188] sm:$0xff]
          %v970 = vld [vmem:[#allocation3 + $0x190] sm:$0xff]
          %v971 = vld [vmem:[#allocation3 + $0x198] sm:$0xff]
          %v972 = vld [vmem:[#allocation3 + $0x1a0] sm:$0xff]
          %v973 = vld [vmem:[#allocation3 + $0x1a8] sm:$0xff]
          %v974 = vld [vmem:[#allocation3 + $0x1b0] sm:$0xff]
          %v975 = vld [vmem:[#allocation3 + $0x1b8] sm:$0xff]
          %v976 = vld [vmem:[#allocation3 + $0x1c0] sm:$0xff]
          %v977 = vld [vmem:[#allocation3 + $0x1c8] sm:$0xff]
          %v978 = vld [vmem:[#allocation3 + $0x1d0] sm:$0xff]
          %v979 = vld [vmem:[#allocation3 + $0x1d8] sm:$0xff]
          %v980 = vld [vmem:[#allocation3 + $0x1e0] sm:$0xff]
          %v981 = vld [vmem:[#allocation3 + $0x1e8] sm:$0xff]
          %v982 = vld [vmem:[#allocation3 + $0x1f0] sm:$0xff]
          %v983 = vld [vmem:[#allocation3 + $0x1f8] sm:$0xff]
          %984 = vmatpush.msra.mxu0 %v935
          %985 = vmatpush.msra.mxu0 %v934
          %986 = vmatpush.msra.mxu0 %v933
          %987 = vmatpush.msra.mxu0 %v932
          %988 = vmatpush.msra.mxu0 %v931
          %989 = vmatpush.msra.mxu0 %v930
          %990 = vmatpush.msra.mxu0 %v929
          %991 = vmatpush.msra.mxu0 %v928
          %992 = vmatpush.msra.mxu0 %v927
          %993 = vmatpush.msra.mxu0 %v926
          %994 = vmatpush.msra.mxu0 %v925
          %995 = vmatpush.msra.mxu0 %v924
          %996 = vmatpush.msra.mxu0 %v923
          %997 = vmatpush.msra.mxu0 %v922
          %998 = vmatpush.msra.mxu0 %v921
          %999 = vmatpush.msra.mxu0 %v920
          %1000 = vmatmul.f32.gmra.mxu0 %v916
          %v1001 = vpop.f32.mrf.mxu0
          %v1002 = vadd.f32 0.0, %v1001
          %1003 = vdwg.mxu0
          %1004 = vmatpush.msra.mxu0 %v951
          %1005 = vmatpush.msra.mxu0 %v950
          %1006 = vmatpush.msra.mxu0 %v949
          %1007 = vmatpush.msra.mxu0 %v948
          %1008 = vmatpush.msra.mxu0 %v947
          %1009 = vmatpush.msra.mxu0 %v946
          %1010 = vmatpush.msra.mxu0 %v945
          %1011 = vmatpush.msra.mxu0 %v944
          %1012 = vmatpush.msra.mxu0 %v943
          %1013 = vmatpush.msra.mxu0 %v942
          %1014 = vmatpush.msra.mxu0 %v941
          %1015 = vmatpush.msra.mxu0 %v940
          %1016 = vmatpush.msra.mxu0 %v939
          %1017 = vmatpush.msra.mxu0 %v938
          %1018 = vmatpush.msra.mxu0 %v937
          %1019 = vmatpush.msra.mxu0 %v936
          %1020 = vmatmul.f32.gmra.mxu0 %v917
          %v1021 = vpop.f32.mrf.mxu0
          %v1022 = vadd.f32 %v1002, %v1021
          %1023 = vdwg.mxu0
          %1024 = vmatpush.msra.mxu0 %v967
          %1025 = vmatpush.msra.mxu0 %v966
          %1026 = vmatpush.msra.mxu0 %v965
          %1027 = vmatpush.msra.mxu0 %v964
          %1028 = vmatpush.msra.mxu0 %v963
          %1029 = vmatpush.msra.mxu0 %v962
          %1030 = vmatpush.msra.mxu0 %v961
          %1031 = vmatpush.msra.mxu0 %v960
          %1032 = vmatpush.msra.mxu0 %v959
          %1033 = vmatpush.msra.mxu0 %v958
          %1034 = vmatpush.msra.mxu0 %v957
          %1035 = vmatpush.msra.mxu0 %v956
          %1036 = vmatpush.msra.mxu0 %v955
          %1037 = vmatpush.msra.mxu0 %v954
          %1038 = vmatpush.msra.mxu0 %v953
          %1039 = vmatpush.msra.mxu0 %v952
          %1040 = vmatmul.f32.gmra.mxu0 %v918
          %v1041 = vpop.f32.mrf.mxu0
          %v1042 = vadd.f32 %v1022, %v1041
          %1043 = vdwg.mxu0
          %1044 = vmatpush.msra.mxu0 %v983
          %1045 = vmatpush.msra.mxu0 %v982
          %1046 = vmatpush.msra.mxu0 %v981
          %1047 = vmatpush.msra.mxu0 %v980
          %1048 = vmatpush.msra.mxu0 %v979
          %1049 = vmatpush.msra.mxu0 %v978
          %1050 = vmatpush.msra.mxu0 %v977
          %1051 = vmatpush.msra.mxu0 %v976
          %1052 = vmatpush.msra.mxu0 %v975
          %1053 = vmatpush.msra.mxu0 %v974
          %1054 = vmatpush.msra.mxu0 %v973
          %1055 = vmatpush.msra.mxu0 %v972
          %1056 = vmatpush.msra.mxu0 %v971
          %1057 = vmatpush.msra.mxu0 %v970
          %1058 = vmatpush.msra.mxu0 %v969
          %1059 = vmatpush.msra.mxu0 %v968
          %1060 = vmatmul.f32.gmra.mxu0 %v919
          %v1061 = vpop.f32.mrf.mxu0
          %v1062 = vadd.f32 %v1042, %v1061
          %1063 = vdwg.mxu0
          %v1064 = vrot.slane %v1062, 4
          %v1065 = vadd.f32 %v1062, %v1064
          %v1066 = vrot.slane %v1065, 2
          %v1067 = vadd.f32 %v1065, %v1066
          %v1068 = vrot.slane %v1067, 1
          %v1069 = vadd.f32 %v1067, %v1068
          %v1070 = vld [vmem:[%s3] sm:$0x1]
          %v1071 = vadd.f32 %v1069, %v1070
          %v1072 = vperm.slane %v1071, 0
          %1073 = vst [vmem:[%s219] sm:$0xff] %v1072
        $region48: #{tpu_custom_call.1} parent=35 // pred_fallthru
          _
        %s1074 = sand.u32 %s128, 1
        %s1075 = scalar_lea.sflag [#allocation5], %s1074
        %s1076 = sand.u32 %s128, 1
        %s1077 = smul.addr %s1076, 8
        %s1078 = scalar_lea.vmem [#allocation6], %s1077
        // Predicated region
        $region49: #{tpu_custom_call.1} parent=35 // pred_check
          %p1079 = pneg %p138
        $region50: #{tpu_custom_call.1} parent=35 // pred_check_branch
          %1081 = sbr.rel (%p1079) target = $region52
        $region51: #{tpu_custom_call.1} parent=35 // pred_region
          %1083 = vsyncadd %s1075, 0
          %s1084 = smul.addr %s23, 8
          %s1085 = scalar_lea.hbm %s4, %s1084
          %s1087 = sshll.u32 %s1078, 4
          %s1088 = int_to_ptr.vmem [resolvable:$true] %s1087
          %s1089 = sshll.u32 %s1085, 4
          %s1090 = int_to_ptr.hbm [resolvable:$true] %s1089
          %1092 = dma.vmem_to_hbm [thread:$0]  %s1088, 128, %s1090, %s1075
        $region52: #{tpu_custom_call.1} parent=35 // pred_fallthru
          _
      $region36: #{tpu_custom_call.1} parent=5 // pred_fallthru
        _
      %p1093 = scmp.le.s32.totalorder 2, %s14
      // Predicated region
      $region53: #{tpu_custom_call.1} parent=5 // pred_check
        %p1094 = pneg %p1093
      $region54: #{tpu_custom_call.1} parent=5 // pred_check_branch
        %1096 = sbr.rel (%p1094) target = $region56
      $region55: #{tpu_custom_call.1} parent=5 // pred_region
        %s1097 = ssub.s32 %s14, 2
        // Predicated region
        $region57: #{tpu_custom_call.1} parent=55 // pred_check
          %p1098 = pneg %p144
        $region58: #{tpu_custom_call.1} parent=55 // pred_check_branch
          %1100 = sbr.rel (%p1098) target = $region60
        $region59: #{tpu_custom_call.1} parent=55 // pred_region
          %s1101 = sand.u32 %s129, 1
          %s1102 = scalar_lea.sflag [#allocation5], %s1101
          %s1103 = sand.u32 %s129, 1
          %s1104 = smul.addr %s1103, 8
          %s1105 = scalar_lea.vmem [#allocation6], %s1104
          %1107 = dma.done %s1102, 128
        $region60: #{tpu_custom_call.1} parent=55 // pred_fallthru
          _
      $region56: #{tpu_custom_call.1} parent=5 // pred_fallthru
        _
    $region6: #{tpu_custom_call.1} parent=1 // loop_footer
      %s18 = sadd.s32 1, %s14
    $region7: #{tpu_custom_call.1} parent=1 // loop_footer_branch
      %13 = sbr.rel target = $region3
    $region8: #{tpu_custom_call.1} parent=1 // loop_exit
      _
    %1108 = vsyncpa [#allocation4], 1
    %s1109 = scalar_lea.sflag [#allocation4], 1
    %1110 = vsyncpa %s1109, 1
    %1111 = vsyncpa [#allocation5], 1
    %s1112 = scalar_lea.sflag [#allocation5], 1
    %1113 = vsyncpa %s1112, 1

</llo_original>
